<compile_context>
chip_gen: v6e
topology: v6e:2x2x1
jax: 0.10.0
libtpu: 0.0.40
codegen_flags: <defaults>
</compile_context>

<pallas_src>
import jax
import jax.numpy as jnp
from jax.experimental import pallas as pl
from jax.experimental.pallas import tpu as pltpu

IN_DIM = 3      # blackjack state: (player sum, dealer showing, usable ace)
HIDDEN = 32
OUT_DIM = 2     # Q-values for the two actions


def dqn_mlp_kernel(x_ref, w1_ref, b1_ref, w2_ref, b2_ref, w3_ref, b3_ref, o_ref):
    # x_ref: (IN_DIM, TILE_B)   batch on the lane axis (lane-dense).
    x = x_ref[...]
    w1 = w1_ref[...]                     # (HIDDEN, IN_DIM)

    # layer_0: Linear(3 -> 32) on the VPU (K=3 would waste an MXU pass).
    # h[o, b] = sum_k w1[o, k] * x[k, b] + b1[o]
    h = b1_ref[...] + w1[:, 0:1] * x[0:1, :]
    h = h + w1[:, 1:2] * x[1:2, :]
    h = h + w1[:, 2:3] * x[2:3, :]
    # layer_1: ReLU
    h = jnp.maximum(h, 0.0)

    # layer_2: Linear(32 -> 32) on the MXU  +  layer_3: ReLU
    h = jnp.dot(w2_ref[...], h, preferred_element_type=jnp.float32)
    h = jnp.maximum(h + b2_ref[...], 0.0)

    # layer_4: Linear(32 -> 2) on the MXU (no final activation; raw Q-values)
    q = jnp.dot(w3_ref[...], h, preferred_element_type=jnp.float32) + b3_ref[...]
    o_ref[...] = q.astype(o_ref.dtype)   # (OUT_DIM, TILE_B) — lane-dense store


def _round_up(n, m):
    return ((n + m - 1) // m) * m


def dqn_forward(x, params, *, tile_b=512):
    """x: (B, IN_DIM) float32.  params: dict of weights/biases (see init_params).

    Returns (B, OUT_DIM) Q-values, numerically identical to the PyTorch module.
    """
    B = x.shape[0]
    # Lane axis tiles must be multiples of 128; small batches just use one tile.
    tile_b = min(tile_b, _round_up(B, 128))
    b_pad = _round_up(B, tile_b)
    # Layout plumbing in the wrapper: pad batch, put batch on the lane axis.
    x_t = jnp.pad(x, ((0, b_pad - B), (0, 0))).T          # (IN_DIM, b_pad)

    grid = (b_pad // tile_b,)
    const = lambda i: (0, 0)     # weights/biases: resident across batch tiles

    q_t = pl.pallas_call(
        dqn_mlp_kernel,
        out_shape=jax.ShapeDtypeStruct((OUT_DIM, b_pad), jnp.float32),
        grid=grid,
        in_specs=[
            pl.BlockSpec((IN_DIM, tile_b), lambda i: (0, i)),    # x tile
            pl.BlockSpec((HIDDEN, IN_DIM), const),               # w1
            pl.BlockSpec((HIDDEN, 1), const),                    # b1
            pl.BlockSpec((HIDDEN, HIDDEN), const),               # w2
            pl.BlockSpec((HIDDEN, 1), const),                    # b2
            pl.BlockSpec((OUT_DIM, HIDDEN), const),              # w3
            pl.BlockSpec((OUT_DIM, 1), const),                   # b3
        ],
        out_specs=pl.BlockSpec((OUT_DIM, tile_b), lambda i: (0, i)),
        compiler_params=pltpu.CompilerParams(
            dimension_semantics=("parallel",)),
    )(
        x_t,
        params["w1"], params["b1"],
        params["w2"], params["b2"],
        params["w3"], params["b3"],
    )
    return q_t[:, :B].T                                     # (B, OUT_DIM)


def init_params(key):
    """Deterministic synthetic init matching nn.Linear.

    Weights kept in PyTorch's native (out_features, in_features) layout;
    biases kept 2-D (out_features, 1) so they broadcast along lanes for free.
    """
    k1, k2, k3, k4, k5, k6 = jax.random.split(key, 6)
    s1 = 1.0 / jnp.sqrt(IN_DIM)
    s2 = 1.0 / jnp.sqrt(HIDDEN)
    return {
        "w1": jax.random.uniform(k1, (HIDDEN, IN_DIM), jnp.float32, -s1, s1),
        "b1": jax.random.uniform(k2, (HIDDEN, 1), jnp.float32, -s1, s1),
        "w2": jax.random.uniform(k3, (HIDDEN, HIDDEN), jnp.float32, -s2, s2),
        "b2": jax.random.uniform(k4, (HIDDEN, 1), jnp.float32, -s2, s2),
        "w3": jax.random.uniform(k5, (OUT_DIM, HIDDEN), jnp.float32, -s2, s2),
        "b3": jax.random.uniform(k6, (OUT_DIM, 1), jnp.float32, -s2, s2),
    }


def dqn_forward_ref(x, p):
    h = jnp.maximum(x @ p["w1"].T + p["b1"].T, 0.0)
    h = jnp.maximum(h @ p["w2"].T + p["b2"].T, 0.0)
    return h @ p["w3"].T + p["b3"].T


if __name__ == "__main__":
    key = jax.random.PRNGKey(0)
    kx, kp = jax.random.split(key)

    batch = 8
    # Synthetic blackjack-like states, cast to float32 as the PyTorch code would.
    x = jax.random.uniform(kx, (batch, IN_DIM), jnp.float32, 0.0, 21.0)
    params = init_params(kp)

    out = jax.block_until_ready(dqn_forward(x, params))
    ref = dqn_forward_ref(x, params)
    assert out.shape == (batch, OUT_DIM)
    assert jnp.allclose(out, ref, atol=1e-5, rtol=1e-5)

    # Also exercise the multi-tile (gridded) path with a non-multiple batch.
    big_b = 1000
    xb = jax.random.uniform(jax.random.PRNGKey(1), (big_b, IN_DIM),
                            jnp.float32, 0.0, 21.0)
    out_b = jax.block_until_ready(dqn_forward(xb, params, tile_b=512))
    ref_b = dqn_forward_ref(xb, params)
    assert out_b.shape == (big_b, OUT_DIM)
    assert jnp.allclose(out_b, ref_b, atol=1e-5, rtol=1e-5)

    # TODO(synk): optionally fuse the greedy argmax over the 2 Q-values into the
    # kernel epilogue for the RL action-selection path (kept raw Q-values here
    # to preserve the module's forward semantics).
    print("KERNEL_OK")
</pallas_src>

<mosaic_0001>
module attributes {stable_mosaic.version = 11 : i64} {
  func.func @dqn_mlp_kernel(%arg0: i32, %arg1: memref<3x128xf32, #tpu.memory_space<vmem>>, %arg2: memref<32x3xf32, #tpu.memory_space<vmem>>, %arg3: memref<32x1xf32, #tpu.memory_space<vmem>>, %arg4: memref<32x32xf32, #tpu.memory_space<vmem>>, %arg5: memref<32x1xf32, #tpu.memory_space<vmem>>, %arg6: memref<2x32xf32, #tpu.memory_space<vmem>>, %arg7: memref<2x1xf32, #tpu.memory_space<vmem>>, %arg8: memref<2x128xf32, #tpu.memory_space<vmem>>) attributes {dimension_semantics = [#tpu.dimension_semantics<parallel>], iteration_bounds = array<i64: 1>, scalar_prefetch = 0 : i64, scratch_operands = 0 : i64, tpu.core_type = #tpu.core_type<tc>, window_params = [{transform_indices = @transform_0, window_bounds = array<i64: 3, 128>}, {pipeline_mode = #tpu.pipeline_mode<synchronous>, transform_indices = @transform_1, window_bounds = array<i64: 32, 3>}, {pipeline_mode = #tpu.pipeline_mode<synchronous>, transform_indices = @transform_2, window_bounds = array<i64: 32, 1>}, {pipeline_mode = #tpu.pipeline_mode<synchronous>, transform_indices = @transform_3, window_bounds = array<i64: 32, 32>}, {pipeline_mode = #tpu.pipeline_mode<synchronous>, transform_indices = @transform_4, window_bounds = array<i64: 32, 1>}, {pipeline_mode = #tpu.pipeline_mode<synchronous>, transform_indices = @transform_5, window_bounds = array<i64: 2, 32>}, {pipeline_mode = #tpu.pipeline_mode<synchronous>, transform_indices = @transform_6, window_bounds = array<i64: 2, 1>}, {transform_indices = @transform_7, window_bounds = array<i64: 2, 128>}]} {
    %c0 = arith.constant 0 : index
    %c0_0 = arith.constant 0 : index
    %0 = vector.load %arg1[%c0, %c0_0] : memref<3x128xf32, #tpu.memory_space<vmem>>, vector<3x128xf32>
    %c0_1 = arith.constant 0 : index
    %c0_2 = arith.constant 0 : index
    %1 = vector.load %arg2[%c0_1, %c0_2] : memref<32x3xf32, #tpu.memory_space<vmem>>, vector<32x3xf32>
    %c0_3 = arith.constant 0 : index
    %c0_4 = arith.constant 0 : index
    %2 = vector.load %arg3[%c0_3, %c0_4] : memref<32x1xf32, #tpu.memory_space<vmem>>, vector<32x1xf32>
    %3 = vector.extract_strided_slice %1 {offsets = [0, 0], sizes = [32, 1], strides = [1, 1]} : vector<32x3xf32> to vector<32x1xf32>
    %4 = vector.extract_strided_slice %0 {offsets = [0, 0], sizes = [1, 128], strides = [1, 1]} : vector<3x128xf32> to vector<1x128xf32>
    %5 = vector.broadcast %3 : vector<32x1xf32> to vector<32x128xf32>
    %6 = vector.broadcast %4 : vector<1x128xf32> to vector<32x128xf32>
    %7 = arith.mulf %5, %6 : vector<32x128xf32>
    %8 = vector.broadcast %2 : vector<32x1xf32> to vector<32x128xf32>
    %9 = arith.addf %8, %7 : vector<32x128xf32>
    %10 = vector.extract_strided_slice %1 {offsets = [0, 1], sizes = [32, 1], strides = [1, 1]} : vector<32x3xf32> to vector<32x1xf32>
    %11 = vector.extract_strided_slice %0 {offsets = [1, 0], sizes = [1, 128], strides = [1, 1]} : vector<3x128xf32> to vector<1x128xf32>
    %12 = vector.broadcast %10 : vector<32x1xf32> to vector<32x128xf32>
    %13 = vector.broadcast %11 : vector<1x128xf32> to vector<32x128xf32>
    %14 = arith.mulf %12, %13 : vector<32x128xf32>
    %15 = arith.addf %9, %14 : vector<32x128xf32>
    %16 = vector.extract_strided_slice %1 {offsets = [0, 2], sizes = [32, 1], strides = [1, 1]} : vector<32x3xf32> to vector<32x1xf32>
    %17 = vector.extract_strided_slice %0 {offsets = [2, 0], sizes = [1, 128], strides = [1, 1]} : vector<3x128xf32> to vector<1x128xf32>
    %18 = vector.broadcast %16 : vector<32x1xf32> to vector<32x128xf32>
    %19 = vector.broadcast %17 : vector<1x128xf32> to vector<32x128xf32>
    %20 = arith.mulf %18, %19 : vector<32x128xf32>
    %21 = arith.addf %15, %20 : vector<32x128xf32>
    %cst = arith.constant 0.000000e+00 : f32
    %22 = vector.broadcast %cst : f32 to vector<32x128xf32>
    %23 = arith.maximumf %21, %22 : vector<32x128xf32>
    %c0_5 = arith.constant 0 : index
    %c0_6 = arith.constant 0 : index
    %24 = vector.load %arg4[%c0_5, %c0_6] : memref<32x32xf32, #tpu.memory_space<vmem>>, vector<32x32xf32>
    %cst_7 = arith.constant dense<0.000000e+00> : vector<32x128xf32>
    %25 = tpu.matmul %24, %23, %cst_7 {dimension_numbers = #tpu.dot_dimension_numbers<[1], [0], [0], [1], [0, 0, 1, 1], [], []>} : vector<32x32xf32>, vector<32x128xf32>, vector<32x128xf32> -> vector<32x128xf32>
    %c0_8 = arith.constant 0 : index
    %c0_9 = arith.constant 0 : index
    %26 = vector.load %arg5[%c0_8, %c0_9] : memref<32x1xf32, #tpu.memory_space<vmem>>, vector<32x1xf32>
    %27 = vector.broadcast %26 : vector<32x1xf32> to vector<32x128xf32>
    %28 = arith.addf %25, %27 : vector<32x128xf32>
    %cst_10 = arith.constant 0.000000e+00 : f32
    %29 = vector.broadcast %cst_10 : f32 to vector<32x128xf32>
    %30 = arith.maximumf %28, %29 : vector<32x128xf32>
    %c0_11 = arith.constant 0 : index
    %c0_12 = arith.constant 0 : index
    %31 = vector.load %arg6[%c0_11, %c0_12] : memref<2x32xf32, #tpu.memory_space<vmem>>, vector<2x32xf32>
    %cst_13 = arith.constant dense<0.000000e+00> : vector<2x128xf32>
    %32 = tpu.matmul %31, %30, %cst_13 {dimension_numbers = #tpu.dot_dimension_numbers<[1], [0], [0], [1], [0, 0, 1, 1], [], []>} : vector<2x32xf32>, vector<32x128xf32>, vector<2x128xf32> -> vector<2x128xf32>
    %c0_14 = arith.constant 0 : index
    %c0_15 = arith.constant 0 : index
    %33 = vector.load %arg7[%c0_14, %c0_15] : memref<2x1xf32, #tpu.memory_space<vmem>>, vector<2x1xf32>
    %34 = vector.broadcast %33 : vector<2x1xf32> to vector<2x128xf32>
    %35 = arith.addf %32, %34 : vector<2x128xf32>
    %c0_16 = arith.constant 0 : index
    %c0_17 = arith.constant 0 : index
    %36 = vector.load %arg8[%c0_16, %c0_17] : memref<2x128xf32, #tpu.memory_space<vmem>>, vector<2x128xf32>
    tpu.vector_store %arg8[%c0_16, %c0_17], %35 {strides = array<i32>} : memref<2x128xf32, #tpu.memory_space<vmem>>, vector<2x128xf32>,
    return
  }
  func.func @transform_0(%arg0: i32) -> (i32, i32) {
    %c0_i32 = arith.constant 0 : i32
    %c0_i32_0 = arith.constant 0 : i32
    return %c0_i32, %arg0 : i32, i32
  }
  func.func @transform_1(%arg0: i32) -> (i32, i32) {
    %c0_i32 = arith.constant 0 : i32
    %c0_i32_0 = arith.constant 0 : i32
    %c0_i32_1 = arith.constant 0 : i32
    return %c0_i32, %c0_i32_0 : i32, i32
  }
  func.func @transform_2(%arg0: i32) -> (i32, i32) {
    %c0_i32 = arith.constant 0 : i32
    %c0_i32_0 = arith.constant 0 : i32
    %c0_i32_1 = arith.constant 0 : i32
    return %c0_i32, %c0_i32_0 : i32, i32
  }
  func.func @transform_3(%arg0: i32) -> (i32, i32) {
    %c0_i32 = arith.constant 0 : i32
    %c0_i32_0 = arith.constant 0 : i32
    %c0_i32_1 = arith.constant 0 : i32
    return %c0_i32, %c0_i32_0 : i32, i32
  }
  func.func @transform_4(%arg0: i32) -> (i32, i32) {
    %c0_i32 = arith.constant 0 : i32
    %c0_i32_0 = arith.constant 0 : i32
    %c0_i32_1 = arith.constant 0 : i32
    return %c0_i32, %c0_i32_0 : i32, i32
  }
  func.func @transform_5(%arg0: i32) -> (i32, i32) {
    %c0_i32 = arith.constant 0 : i32
    %c0_i32_0 = arith.constant 0 : i32
    %c0_i32_1 = arith.constant 0 : i32
    return %c0_i32, %c0_i32_0 : i32, i32
  }
  func.func @transform_6(%arg0: i32) -> (i32, i32) {
    %c0_i32 = arith.constant 0 : i32
    %c0_i32_0 = arith.constant 0 : i32
    %c0_i32_1 = arith.constant 0 : i32
    return %c0_i32, %c0_i32_0 : i32, i32
  }
  func.func @transform_7(%arg0: i32) -> (i32, i32) {
    %c0_i32 = arith.constant 0 : i32
    %c0_i32_0 = arith.constant 0 : i32
    return %c0_i32, %arg0 : i32, i32
  }
}

</mosaic_0001>

<llo_original>
// kernel: tpu_custom_call.1
$region0: #{tpu_custom_call.1}
  #allocation0 [shape = 'u32[]', space=smem, size = 0x4, offset = 0x4, fixed_abs, tag = 'smem constant byte address 0x4 - core index']
  #allocation1 [shape = 'u32[144,128]{1,0:T(1,128)}', space=vmem, size = 0x12000, scoped, tag = 'internal scratch']
  %s0 = inlined_call_operand.vmem [shape: f32[3,128], index: 0, kind: input, shape index: {}]
  %s1 = inlined_call_operand.vmem [shape: f32[32,3], index: 1, kind: input, shape index: {}]
  %s2 = inlined_call_operand.vmem [shape: f32[32,1], index: 2, kind: input, shape index: {}]
  %s3 = inlined_call_operand.vmem [shape: f32[32,32], index: 3, kind: input, shape index: {}]
  %s4 = inlined_call_operand.vmem [shape: f32[32,1], index: 4, kind: input, shape index: {}]
  %s5 = inlined_call_operand.vmem [shape: f32[2,32], index: 5, kind: input, shape index: {}]
  %s6 = inlined_call_operand.vmem [shape: f32[2,1], index: 6, kind: input, shape index: {}]
  %s7 = inlined_call_operand.hbm [shape: f32[2,128], index: 7, kind: output, shape index: {}]
  %s8 = sld [smem:[#allocation0]]
  $region38: #{tpu_custom_call.1} parent=0
    _
  %s10 = ssub.s32 1, %s8
  %s11 = scalar_select 0, %s10, %s8
  $region1: #{tpu_custom_call.1} parent=0
    #allocation2 [shape = 'u8[1024]{0}', space=vmem, size = 0x400, scoped, tag = 'output window, operand 0, single buffered']
    #allocation3 [shape = 's32[1]{0}', space=sflag, size = 0x4, scoped, tag = 'scoped memory for tpu_custom_call.1']
    %12 = vsyncpa [#allocation3], 0
    // Predicated region
    $region2: #{tpu_custom_call.1} parent=1 // pred_check
      _
    $region3: #{tpu_custom_call.1} parent=1 // pred_check_branch
      %14 = sbr.rel (0) target = $region5
    $region4: #{tpu_custom_call.1} parent=1 // pred_region
      _
    $region5: #{tpu_custom_call.1} parent=1 // pred_fallthru
      _
    // Predicated region
    $region6: #{tpu_custom_call.1} parent=1 // pred_check
      _
    $region7: #{tpu_custom_call.1} parent=1 // pred_check_branch
      %16 = sbr.rel (0) target = $region9
    $region8: #{tpu_custom_call.1} parent=1 // pred_region
      _
    $region9: #{tpu_custom_call.1} parent=1 // pred_fallthru
      _
    // Predicated region
    $region10: #{tpu_custom_call.1} parent=1 // pred_check
      _
    $region11: #{tpu_custom_call.1} parent=1 // pred_check_branch
      %18 = sbr.rel (0) target = $region13
    $region12: #{tpu_custom_call.1} parent=1 // pred_region
      _
    $region13: #{tpu_custom_call.1} parent=1 // pred_fallthru
      _
    // Predicated region
    $region14: #{tpu_custom_call.1} parent=1 // pred_check
      _
    $region15: #{tpu_custom_call.1} parent=1 // pred_check_branch
      %20 = sbr.rel (0) target = $region17
    $region16: #{tpu_custom_call.1} parent=1 // pred_region
      _
    $region17: #{tpu_custom_call.1} parent=1 // pred_fallthru
      _
    // Predicated region
    $region18: #{tpu_custom_call.1} parent=1 // pred_check
      _
    $region19: #{tpu_custom_call.1} parent=1 // pred_check_branch
      %22 = sbr.rel (0) target = $region21
    $region20: #{tpu_custom_call.1} parent=1 // pred_region
      _
    $region21: #{tpu_custom_call.1} parent=1 // pred_fallthru
      _
    // Predicated region
    $region22: #{tpu_custom_call.1} parent=1 // pred_check
      _
    $region23: #{tpu_custom_call.1} parent=1 // pred_check_branch
      %24 = sbr.rel (0) target = $region25
    $region24: #{tpu_custom_call.1} parent=1 // pred_region
      _
    $region25: #{tpu_custom_call.1} parent=1 // pred_fallthru
      _
    // Predicated region
    $region26: #{tpu_custom_call.1} parent=1 // pred_check
      _
    $region27: #{tpu_custom_call.1} parent=1 // pred_check_branch
      %26 = sbr.rel (0) target = $region29
    $region28: #{tpu_custom_call.1} parent=1 // pred_region
      _
    $region29: #{tpu_custom_call.1} parent=1 // pred_fallthru
      _
    %v27 = vld [vmem:[%s0] sm:$0x7]
    %v28 = vld [vmem:[%s1] sm:$0xff]
    %v29 = vld [vmem:[%s1 + $0x8] sm:$0xff]
    %v30 = vld [vmem:[%s1 + $0x10] sm:$0xff]
    %v31 = vld [vmem:[%s1 + $0x18] sm:$0xff]
    %v32 = vld [vmem:[%s2] sm:$0xff]
    %v33 = vld [vmem:[%s2 + $0x8] sm:$0xff]
    %v34 = vld [vmem:[%s2 + $0x10] sm:$0xff]
    %v35 = vld [vmem:[%s2 + $0x18] sm:$0xff]
    %37 = vset.pattern.permute.xlu0 0
    %38 = vperm.xlu0 %37, %v28
    %v39 = vpop.permute.xlu0 %38
    %42 = vset.pattern.permute.xlu0 0
    %43 = vperm.xlu0 %42, %v29
    %v44 = vpop.permute.xlu0 %43
    %47 = vset.pattern.permute.xlu0 0
    %48 = vperm.xlu0 %47, %v30
    %v49 = vpop.permute.xlu0 %48
    %52 = vset.pattern.permute.xlu0 0
    %53 = vperm.xlu0 %52, %v31
    %v54 = vpop.permute.xlu0 %53
    %v56 = vlaneseq
    %v57 = vshrl.u32 %v56, 7
    %v58 = vsub.s32 0, %v57
    %v59 = vrot.slane %v27, %v58
    %v60 = vmul.f32 %v39, %v59
    %v61 = vmul.f32 %v44, %v59
    %v62 = vmul.f32 %v49, %v59
    %v63 = vmul.f32 %v54, %v59
    %65 = vset.pattern.permute.xlu0 0
    %66 = vperm.xlu0 %65, %v32
    %v67 = vpop.permute.xlu0 %66
    %70 = vset.pattern.permute.xlu0 0
    %71 = vperm.xlu0 %70, %v33
    %v72 = vpop.permute.xlu0 %71
    %75 = vset.pattern.permute.xlu0 0
    %76 = vperm.xlu0 %75, %v34
    %v77 = vpop.permute.xlu0 %76
    %80 = vset.pattern.permute.xlu0 0
    %81 = vperm.xlu0 %80, %v35
    %v82 = vpop.permute.xlu0 %81
    %v84 = vadd.f32 %v67, %v60
    %v85 = vadd.f32 %v72, %v61
    %v86 = vadd.f32 %v77, %v62
    %v87 = vadd.f32 %v82, %v63
    %88 = vset.pattern.permute.xlu0 1
    %89 = vperm.xlu0 %88, %v28
    %v90 = vpop.permute.xlu0 %89
    %92 = vset.pattern.permute.xlu0 1
    %93 = vperm.xlu0 %92, %v29
    %v94 = vpop.permute.xlu0 %93
    %96 = vset.pattern.permute.xlu0 1
    %97 = vperm.xlu0 %96, %v30
    %v98 = vpop.permute.xlu0 %97
    %100 = vset.pattern.permute.xlu0 1
    %101 = vperm.xlu0 %100, %v31
    %v102 = vpop.permute.xlu0 %101
    %v104 = vlaneseq
    %v105 = vshrl.u32 %v104, 7
    %v106 = vsub.s32 1, %v105
    %v107 = vrot.slane %v27, %v106
    %v108 = vmul.f32 %v90, %v107
    %v109 = vmul.f32 %v94, %v107
    %v110 = vmul.f32 %v98, %v107
    %v111 = vmul.f32 %v102, %v107
    %v112 = vadd.f32 %v84, %v108
    %v113 = vadd.f32 %v85, %v109
    %v114 = vadd.f32 %v86, %v110
    %v115 = vadd.f32 %v87, %v111
    %116 = vset.pattern.permute.xlu0 2
    %117 = vperm.xlu0 %116, %v28
    %v118 = vpop.permute.xlu0 %117
    %120 = vset.pattern.permute.xlu0 2
    %121 = vperm.xlu0 %120, %v29
    %v122 = vpop.permute.xlu0 %121
    %124 = vset.pattern.permute.xlu0 2
    %125 = vperm.xlu0 %124, %v30
    %v126 = vpop.permute.xlu0 %125
    %128 = vset.pattern.permute.xlu0 2
    %129 = vperm.xlu0 %128, %v31
    %v130 = vpop.permute.xlu0 %129
    %v132 = vlaneseq
    %v133 = vshrl.u32 %v132, 7
    %v134 = vsub.s32 2, %v133
    %v135 = vrot.slane %v27, %v134
    %v136 = vmul.f32 %v118, %v135
    %v137 = vmul.f32 %v122, %v135
    %v138 = vmul.f32 %v126, %v135
    %v139 = vmul.f32 %v130, %v135
    %v140 = vadd.f32 %v112, %v136
    %v141 = vadd.f32 %v113, %v137
    %v142 = vadd.f32 %v114, %v138
    %v143 = vadd.f32 %v115, %v139
    %v144 = vmax.f32 %v140, 0.0
    %v145 = vmax.f32 %v141, 0.0
    %v146 = vmax.f32 %v142, 0.0
    %v147 = vmax.f32 %v143, 0.0
    %v148 = vld [vmem:[%s3] sm:$0xff]
    %v149 = vld [vmem:[%s3 + $0x8] sm:$0xff]
    %v150 = vld [vmem:[%s3 + $0x10] sm:$0xff]
    %v151 = vld [vmem:[%s3 + $0x18] sm:$0xff]
    %v152 = vld [vmem:[%s4] sm:$0xff]
    %v153 = vld [vmem:[%s4 + $0x8] sm:$0xff]
    %v154 = vld [vmem:[%s4 + $0x10] sm:$0xff]
    %v155 = vld [vmem:[%s4 + $0x18] sm:$0xff]
    %157 = vset.pattern.permute.xlu0 0
    %158 = vperm.xlu0 %157, %v152
    %v159 = vpop.permute.xlu0 %158
    %162 = vset.pattern.permute.xlu0 0
    %163 = vperm.xlu0 %162, %v153
    %v164 = vpop.permute.xlu0 %163
    %167 = vset.pattern.permute.xlu0 0
    %168 = vperm.xlu0 %167, %v154
    %v169 = vpop.permute.xlu0 %168
    %172 = vset.pattern.permute.xlu0 0
    %173 = vperm.xlu0 %172, %v155
    %v174 = vpop.permute.xlu0 %173
    %vm176 = vcmask 261120
    %v178 = vsel %vm176, %v148, 0
    %v181 = vsel %vm176, %v149, 0
    %v184 = vsel %vm176, %v150, 0
    %v187 = vsel %vm176, %v151, 0
    %189 = vmatprep.subr.mxu0 0.0
    %190 = vmatpush1.msra.mxu0 0.0
    %191 = vmatprep.subr.mxu0 0.0
    %192 = vmatpush1.msra.mxu0 0.0
    %193 = vmatprep.subr.mxu0 0.0
    %194 = vmatpush1.msra.mxu0 0.0
    %195 = vmatprep.subr.mxu0 0.0
    %196 = vmatpush1.msra.mxu0 0.0
    %197 = vmatprep.subr.mxu0 0.0
    %198 = vmatpush1.msra.mxu0 0.0
    %199 = vmatprep.subr.mxu0 0.0
    %200 = vmatpush1.msra.mxu0 0.0
    %201 = vmatprep.subr.mxu0 0.0
    %202 = vmatpush1.msra.mxu0 0.0
    %203 = vmatprep.subr.mxu0 0.0
    %204 = vmatpush1.msra.mxu0 0.0
    %205 = vmatprep.subr.mxu0 0.0
    %206 = vmatpush1.msra.mxu0 0.0
    %207 = vmatprep.subr.mxu0 0.0
    %208 = vmatpush1.msra.mxu0 0.0
    %209 = vmatprep.subr.mxu0 0.0
    %210 = vmatpush1.msra.mxu0 0.0
    %211 = vmatprep.subr.mxu0 0.0
    %212 = vmatpush1.msra.mxu0 0.0
    %213 = vmatprep.subr.mxu0 0.0
    %214 = vmatpush1.msra.mxu0 %v147
    %215 = vmatprep.subr.mxu0 0.0
    %216 = vmatpush1.msra.mxu0 %v146
    %217 = vmatprep.subr.mxu0 0.0
    %218 = vmatpush1.msra.mxu0 %v145
    %219 = vmatprep.subr.mxu0 0.0
    %220 = vmatpush1.msra.mxu0 %v144
    %221 = vmatprep.subr.mxu0 0.0
    %222 = vmatpush2.msra.mxu0 0.0
    %223 = vmatprep.subr.mxu0 0.0
    %224 = vmatpush2.msra.mxu0 0.0
    %225 = vmatprep.subr.mxu0 0.0
    %226 = vmatpush2.msra.mxu0 0.0
    %227 = vmatprep.subr.mxu0 0.0
    %228 = vmatpush2.msra.mxu0 0.0
    %229 = vmatprep.subr.mxu0 0.0
    %230 = vmatpush2.msra.mxu0 0.0
    %231 = vmatprep.subr.mxu0 0.0
    %232 = vmatpush2.msra.mxu0 0.0
    %233 = vmatprep.subr.mxu0 0.0
    %234 = vmatpush2.msra.mxu0 0.0
    %235 = vmatprep.subr.mxu0 0.0
    %236 = vmatpush2.msra.mxu0 0.0
    %237 = vmatprep.subr.mxu0 0.0
    %238 = vmatpush2.msra.mxu0 0.0
    %239 = vmatprep.subr.mxu0 0.0
    %240 = vmatpush2.msra.mxu0 0.0
    %241 = vmatprep.subr.mxu0 0.0
    %242 = vmatpush2.msra.mxu0 0.0
    %243 = vmatprep.subr.mxu0 0.0
    %244 = vmatpush2.msra.mxu0 0.0
    %245 = vmatprep.subr.mxu0 0.0
    %246 = vmatpush2.msra.mxu0 0.0
    %247 = vmatprep.subr.mxu0 0.0
    %248 = vmatpush2.msra.mxu0 0.0
    %249 = vmatprep.subr.mxu0 0.0
    %250 = vmatpush2.msra.mxu0 0.0
    %251 = vmatprep.subr.mxu0 0.0
    %252 = vmatpush2.msra.mxu0 0.0
    %253 = vmatprep.mubr.f32.mxu0 0.0
    %254 = vmatmul.mubr.f32.gmra.mxu0 %v178
    %v255 = vpop.f32.mrf.mxu0
    %v256 = vadd.f32 %v159, %v255
    %v257 = vpop.f32.mrf.mxu0
    %258 = vmatprep.mubr.f32.mxu0 0.0
    %259 = vmatmul.mubr.f32.gmra.mxu0 %v181
    %v260 = vpop.f32.mrf.mxu0
    %v261 = vadd.f32 %v164, %v260
    %v262 = vpop.f32.mrf.mxu0
    %263 = vmatprep.mubr.f32.mxu0 0.0
    %264 = vmatmul.mubr.f32.gmra.mxu0 %v184
    %v265 = vpop.f32.mrf.mxu0
    %v266 = vadd.f32 %v169, %v265
    %v267 = vpop.f32.mrf.mxu0
    %268 = vmatprep.mubr.f32.mxu0 0.0
    %269 = vmatmul.mubr.f32.gmra.mxu0 %v187
    %v270 = vpop.f32.mrf.mxu0
    %v271 = vadd.f32 %v174, %v270
    %v272 = vpop.f32.mrf.mxu0
    %273 = vdwg.mxu0
    %v274 = vmax.f32 %v256, 0.0
    %v275 = vmax.f32 %v261, 0.0
    %v276 = vmax.f32 %v266, 0.0
    %v277 = vmax.f32 %v271, 0.0
    %v278 = vld [vmem:[%s5] sm:$0x3]
    %v279 = vld [vmem:[%s6] sm:$0x3]
    %281 = vset.pattern.permute.xlu0 0
    %282 = vperm.xlu0 %281, %v279
    %v283 = vpop.permute.xlu0 %282
    %v286 = vsel %vm176, %v278, 0
    %288 = vmatprep.subr.mxu0 0.0
    %289 = vmatpush1.msra.mxu0 0.0
    %290 = vmatprep.subr.mxu0 0.0
    %291 = vmatpush1.msra.mxu0 0.0
    %292 = vmatprep.subr.mxu0 0.0
    %293 = vmatpush1.msra.mxu0 0.0
    %294 = vmatprep.subr.mxu0 0.0
    %295 = vmatpush1.msra.mxu0 0.0
    %296 = vmatprep.subr.mxu0 0.0
    %297 = vmatpush1.msra.mxu0 0.0
    %298 = vmatprep.subr.mxu0 0.0
    %299 = vmatpush1.msra.mxu0 0.0
    %300 = vmatprep.subr.mxu0 0.0
    %301 = vmatpush1.msra.mxu0 0.0
    %302 = vmatprep.subr.mxu0 0.0
    %303 = vmatpush1.msra.mxu0 0.0
    %304 = vmatprep.subr.mxu0 0.0
    %305 = vmatpush1.msra.mxu0 0.0
    %306 = vmatprep.subr.mxu0 0.0
    %307 = vmatpush1.msra.mxu0 0.0
    %308 = vmatprep.subr.mxu0 0.0
    %309 = vmatpush1.msra.mxu0 0.0
    %310 = vmatprep.subr.mxu0 0.0
    %311 = vmatpush1.msra.mxu0 0.0
    %312 = vmatprep.subr.mxu0 0.0
    %313 = vmatpush1.msra.mxu0 %v277
    %314 = vmatprep.subr.mxu0 0.0
    %315 = vmatpush1.msra.mxu0 %v276
    %316 = vmatprep.subr.mxu0 0.0
    %317 = vmatpush1.msra.mxu0 %v275
    %318 = vmatprep.subr.mxu0 0.0
    %319 = vmatpush1.msra.mxu0 %v274
    %320 = vmatprep.subr.mxu0 0.0
    %321 = vmatpush2.msra.mxu0 0.0
    %322 = vmatprep.subr.mxu0 0.0
    %323 = vmatpush2.msra.mxu0 0.0
    %324 = vmatprep.subr.mxu0 0.0
    %325 = vmatpush2.msra.mxu0 0.0
    %326 = vmatprep.subr.mxu0 0.0
    %327 = vmatpush2.msra.mxu0 0.0
    %328 = vmatprep.subr.mxu0 0.0
    %329 = vmatpush2.msra.mxu0 0.0
    %330 = vmatprep.subr.mxu0 0.0
    %331 = vmatpush2.msra.mxu0 0.0
    %332 = vmatprep.subr.mxu0 0.0
    %333 = vmatpush2.msra.mxu0 0.0
    %334 = vmatprep.subr.mxu0 0.0
    %335 = vmatpush2.msra.mxu0 0.0
    %336 = vmatprep.subr.mxu0 0.0
    %337 = vmatpush2.msra.mxu0 0.0
    %338 = vmatprep.subr.mxu0 0.0
    %339 = vmatpush2.msra.mxu0 0.0
    %340 = vmatprep.subr.mxu0 0.0
    %341 = vmatpush2.msra.mxu0 0.0
    %342 = vmatprep.subr.mxu0 0.0
    %343 = vmatpush2.msra.mxu0 0.0
    %344 = vmatprep.subr.mxu0 0.0
    %345 = vmatpush2.msra.mxu0 0.0
    %346 = vmatprep.subr.mxu0 0.0
    %347 = vmatpush2.msra.mxu0 0.0
    %348 = vmatprep.subr.mxu0 0.0
    %349 = vmatpush2.msra.mxu0 0.0
    %350 = vmatprep.subr.mxu0 0.0
    %351 = vmatpush2.msra.mxu0 0.0
    %352 = vmatprep.mubr.f32.mxu0 0.0
    %353 = vmatmul.mubr.f32.gmra.mxu0 %v286
    %v354 = vpop.f32.mrf.mxu0
    %v355 = vadd.f32 %v283, %v354
    %v356 = vpop.f32.mrf.mxu0
    %357 = vdwg.mxu0
    %358 = vst [vmem:[#allocation2] sm:$0x3] %v355
    // Predicated region
    $region30: #{tpu_custom_call.1} parent=1 // pred_check
      _
    $region31: #{tpu_custom_call.1} parent=1 // pred_check_branch
      %360 = sbr.rel (0) target = $region33
    $region32: #{tpu_custom_call.1} parent=1 // pred_region
      %s362 = ssub.s32 32, 32
      %363 = vsyncadd [#allocation3], %s362
      %s365 = sshll.u32 [#allocation2], 4
      %s366 = int_to_ptr.vmem [resolvable:$true] %s365
      %368 = dma.vmem_to_hbm [thread:$0]  %s366, 32, %s7, [#allocation3]
    $region33: #{tpu_custom_call.1} parent=1 // pred_fallthru
      _
    // Predicated region
    $region34: #{tpu_custom_call.1} parent=1 // pred_check
      _
    $region35: #{tpu_custom_call.1} parent=1 // pred_check_branch
      %370 = sbr.rel (0) target = $region37
    $region36: #{tpu_custom_call.1} parent=1 // pred_region
      %371 = dma.done [#allocation3], 32
    $region37: #{tpu_custom_call.1} parent=1 // pred_fallthru
      _
    %372 = vsyncpa [#allocation3], 1

</llo_original>
